<compile_context>
chip_gen: v5e
topology: v5e:2x2
jax: 0.10.0
libtpu: 0.0.40
codegen_flags: <defaults>
</compile_context>

<pallas_src>
import numpy as np
import jax
import jax.numpy as jnp
from jax.experimental import pallas as pl
from jax.experimental.pallas import tpu as pltpu


# --------------------------------------------------------------------------
# Host-side weight construction (matches GaussianBlur3D.get_gaussian_kernel3d)
# --------------------------------------------------------------------------
def _gaussian_1d(kernel_size: int, sigma: float) -> np.ndarray:
    coords = np.arange(kernel_size, dtype=np.float64) - (kernel_size - 1) / 2.0
    g = np.exp(-0.5 * (coords / sigma) ** 2)
    return (g / g.sum()).astype(np.float32)


def _gaussian_kernel2d(kernel_size: int, sigma: float) -> np.ndarray:
    g = _gaussian_1d(kernel_size, sigma)
    return np.outer(g, g).astype(np.float32)        # torch builds g[b] * g[i]


def _banded_blur_matrix(n: int, kernel_size: int, sigma: float) -> np.ndarray:
    """(n, n) matrix A such that  out = x @ A  <=>  1-D zero-padded Gaussian blur."""
    g = _gaussian_1d(kernel_size, sigma)
    pad = kernel_size // 2
    a = np.zeros((n, n), dtype=np.float32)
    for i in range(n):                # input index
        for o in range(n):            # output index
            tap = i - o + pad
            if 0 <= tap < kernel_size:
                a[i, o] = g[tap]
    return a


def _blur_matrix_2d(H: int, W: int, kernel_size: int, sigma: float) -> np.ndarray:
    """(H*W, H*W) matrix M with  out_flat = x_flat @ M  <=>  zero-padded 2-D blur
    of a row-major flattened (H, W) image with the separable Gaussian kernel."""
    a_h = _banded_blur_matrix(H, kernel_size, sigma)
    a_w = _banded_blur_matrix(W, kernel_size, sigma)
    return np.kron(a_h, a_w).astype(np.float32)


# --------------------------------------------------------------------------
# Pallas kernel: one MXU matmul per (tn, HW) tile
# --------------------------------------------------------------------------
def _blur_matmul_kernel(m_ref, x_ref, o_ref):
    # m_ref: (HW, HW) blur matrix (same block every grid step -> stays resident)
    # x_ref: (tn, HW)  flattened (b,c,t) slices, lane-dense
    # o_ref: (tn, HW)
    o_ref[...] = jnp.dot(
        x_ref[...], m_ref[...], preferred_element_type=jnp.float32
    ).astype(o_ref.dtype)


def _choose_tile(N: int) -> int:
    """Rows per grid step.

    Aims for (a) >= 2 grid steps so v7x's two TensorCores both get work,
    (b) MXU/DMA-friendly row counts (multiple of 256 once large enough,
    otherwise multiple of 8), (c) <= 1024 rows so double-buffered in + out
    blocks stay ~4 MiB -- comfortably inside every generation's VMEM budget.
    """
    if N <= 8:
        return N                               # tiny workload: single full block
    target = min(1024, -(-N // 2))             # ceil(N/2), capped at 1024 rows
    align = 256 if target >= 256 else 8
    return max(align, (target // align) * align)


# --------------------------------------------------------------------------
# Wrapper
# --------------------------------------------------------------------------
def gaussian_blur3d(x: jax.Array, kernel_size: int = 5, sigma: float = 1.0) -> jax.Array:
    B, C, T, H, W = x.shape
    N = B * C * T
    HW = H * W

    # Free reshape: merge (H, W) into one lane-dense axis; one row per slice.
    xf = x.reshape(N, HW)
    m = jnp.asarray(_blur_matrix_2d(H, W, kernel_size, sigma))   # (HW, HW) f32

    tn = _choose_tile(N)
    grid = (pl.cdiv(N, tn),)     # ragged last block (if any) is masked by Pallas;
                                 # rows are independent so that is safe.

    out = pl.pallas_call(
        _blur_matmul_kernel,
        out_shape=jax.ShapeDtypeStruct((N, HW), x.dtype),
        grid_spec=pltpu.PrefetchScalarGridSpec(
            num_scalar_prefetch=0,
            grid=grid,
            in_specs=[
                pl.BlockSpec((HW, HW), lambda i: (0, 0)),   # blur matrix, resident
                pl.BlockSpec((tn, HW), lambda i: (i, 0)),
            ],
            out_specs=pl.BlockSpec((tn, HW), lambda i: (i, 0)),
        ),
        compiler_params=pltpu.CompilerParams(
            dimension_semantics=("parallel",),
            vmem_limit_bytes=32 * 1024 * 1024,
        ),
    )(m, xf)

    return out.reshape(B, C, T, H, W)


# --------------------------------------------------------------------------
# Pure-JAX reference mirroring F.conv3d(groups=C, padding=(0, p, p))
# --------------------------------------------------------------------------
def _reference_blur3d(x: jax.Array, kernel_size: int = 5, sigma: float = 1.0) -> jax.Array:
    B, C, T, H, W = x.shape
    K = kernel_size
    pad = K // 2
    w2d = jnp.asarray(_gaussian_kernel2d(K, sigma))
    xf = x.reshape(B * C * T, H, W)
    xp = jnp.pad(xf, ((0, 0), (pad, pad), (pad, pad)))
    out = jnp.zeros_like(xf)
    for di in range(K):
        for dj in range(K):
            out = out + w2d[di, dj] * xp[:, di:di + H, dj:dj + W]
    return out.reshape(B, C, T, H, W)


if __name__ == "__main__":
    key = jax.random.PRNGKey(0)
    B, C, T, H, W = 2, 4, 3, 16, 16
    x = jax.random.normal(key, (B, C, T, H, W), dtype=jnp.float32)

    y = gaussian_blur3d(x, kernel_size=5, sigma=1.0)
    y = jax.block_until_ready(y)

    y_ref = _reference_blur3d(x, kernel_size=5, sigma=1.0)
    assert y.shape == (B, C, T, H, W)
    np.testing.assert_allclose(np.asarray(y), np.asarray(y_ref), rtol=1e-4, atol=1e-4)

    print("KERNEL_OK")
</pallas_src>

<mosaic_0001>
module attributes {stable_mosaic.version = 11 : i64} {
  func.func @_blur_matmul_kernel(%arg0: i32, %arg1: memref<256x256xf32, #tpu.memory_space<vmem>>, %arg2: memref<8x256xf32, #tpu.memory_space<vmem>>, %arg3: memref<8x256xf32, #tpu.memory_space<vmem>>) attributes {dimension_semantics = [#tpu.dimension_semantics<parallel>], iteration_bounds = array<i64: 3>, scalar_prefetch = 0 : i64, scratch_operands = 0 : i64, tpu.core_type = #tpu.core_type<tc>, window_params = [{pipeline_mode = #tpu.pipeline_mode<synchronous>, transform_indices = @transform_0, window_bounds = array<i64: 256, 256>}, {transform_indices = @transform_1, window_bounds = array<i64: 8, 256>}, {transform_indices = @transform_2, window_bounds = array<i64: 8, 256>}]} {
    %c0 = arith.constant 0 : index
    %c0_0 = arith.constant 0 : index
    %0 = vector.load %arg2[%c0, %c0_0] : memref<8x256xf32, #tpu.memory_space<vmem>>, vector<8x256xf32>
    %c0_1 = arith.constant 0 : index
    %c0_2 = arith.constant 0 : index
    %1 = vector.load %arg1[%c0_1, %c0_2] : memref<256x256xf32, #tpu.memory_space<vmem>>, vector<256x256xf32>
    %cst = arith.constant dense<0.000000e+00> : vector<8x256xf32>
    %2 = tpu.matmul %0, %1, %cst {dimension_numbers = #tpu.dot_dimension_numbers<[1], [0], [0], [1], [0, 0, 1, 1], [], []>} : vector<8x256xf32>, vector<256x256xf32>, vector<8x256xf32> -> vector<8x256xf32>
    %c0_3 = arith.constant 0 : index
    %c0_4 = arith.constant 0 : index
    %3 = vector.load %arg3[%c0_3, %c0_4] : memref<8x256xf32, #tpu.memory_space<vmem>>, vector<8x256xf32>
    tpu.vector_store %arg3[%c0_3, %c0_4], %2 {strides = array<i32>} : memref<8x256xf32, #tpu.memory_space<vmem>>, vector<8x256xf32>,
    return
  }
  func.func @transform_0(%arg0: i32) -> (i32, i32) {
    %c0_i32 = arith.constant 0 : i32
    %c0_i32_0 = arith.constant 0 : i32
    %c0_i32_1 = arith.constant 0 : i32
    return %c0_i32, %c0_i32_0 : i32, i32
  }
  func.func @transform_1(%arg0: i32) -> (i32, i32) {
    %c0_i32 = arith.constant 0 : i32
    %c0_i32_0 = arith.constant 0 : i32
    return %arg0, %c0_i32 : i32, i32
  }
  func.func @transform_2(%arg0: i32) -> (i32, i32) {
    %c0_i32 = arith.constant 0 : i32
    %c0_i32_0 = arith.constant 0 : i32
    return %arg0, %c0_i32 : i32, i32
  }
}

</mosaic_0001>

<llo_original>
// kernel: tpu_custom_call.1
$region0: #{tpu_custom_call.1}
  #allocation0 [shape = 'u32[]', space=smem, size = 0x4, offset = 0x4, fixed_abs, tag = 'smem constant byte address 0x4 - core index']
  #allocation1 [shape = 'u32[72,128]{1,0:T(1,128)}', space=vmem, size = 0x9000, scoped, tag = 'internal scratch']
  %s0 = inlined_call_operand.hbm [shape: f32[256,256], index: 0, kind: input, shape index: {}]
  %s1 = inlined_call_operand.hbm [shape: f32[24,256], index: 1, kind: input, shape index: {}]
  %s2 = inlined_call_operand.hbm [shape: f32[24,256], index: 2, kind: output, shape index: {}]
  %s3 = sld [smem:[#allocation0]]
  $region49: #{tpu_custom_call.1} parent=0
    _
  %s5 = ssub.s32 1, %s3
  %s6 = scalar_select 0, %s5, %s3
  $region1: #{tpu_custom_call.1} parent=0
    #allocation2 [shape = 'u8[262144]{0}', space=vmem, size = 0x40000, scoped, tag = 'input window, operand 0, single buffered']
    #allocation3 [shape = 's32[2]{0}', space=sflag, size = 0x8, scoped, tag = 'scoped memory for tpu_custom_call.1']
    #allocation4 [shape = 's32[2]{0}', space=sflag, size = 0x8, scoped, tag = 'scoped memory for tpu_custom_call.1']
    #allocation5 [shape = 'u8[16384]{0}', space=vmem, size = 0x4000, scoped, tag = 'input window, operand 1']
    #allocation6 [shape = 's32[2]{0}', space=sflag, size = 0x8, scoped, tag = 'scoped memory for tpu_custom_call.1']
    #allocation7 [shape = 'u8[16384]{0}', space=vmem, size = 0x4000, scoped, tag = 'output window, operand 0']
    %7 = vsyncpa [#allocation3], 0
    %8 = vsyncpa [#allocation6], 0
    %s9 = scalar_lea.sflag [#allocation6], 1
    %10 = vsyncpa %s9, 0
    %11 = vsyncpa [#allocation4], 0
    %s12 = scalar_lea.sflag [#allocation4], 1
    %13 = vsyncpa %s12, 0
    loop: start=0, step=1, limit=5
    $region2: #{tpu_custom_call.1} parent=1 // loop_pre_header
      _
    $region3: #{tpu_custom_call.1} parent=1 // loop_header
      %s15 = sphi 0, %s19
      %p16 = scmp.ge.s32.totalorder %s15, 5
      %s23 = sphi 0, %s23
      %s25 = sphi 0, %s23
      %s26 = sphi 0, %s25
      %s40 = sphi 0, %s26
      %s46 = sphi 0, %s48
      %s49 = sphi 0, %s46
      %s50 = sphi 0, %s49
      %s66 = sphi 0, %s50
      %s72 = sphi 0, %s74
      %s75 = sphi 0, %s72
      %s76 = sphi 0, %s75
      %s92 = sphi 0, %s76
    $region4: #{tpu_custom_call.1} parent=1 // loop_header_branch
      %18 = sbr.rel (%p16) target = $region8
    $region5: #{tpu_custom_call.1} parent=1 // loop_body
      %s20 = ssub.s32 %s15, 1
      %s21 = ssub.s32 %s15, 2
      %s22 = sadd.s32 %s15, 1
      %s24 = sadd.s32 %s23, 1
      %p27 = scmp.eq.s32.totalorder %s15, 2
      %p28 = scmp.ne.s32.totalorder %s23, %s25
      %p29 = scmp.eq.s32.totalorder %s15, 0
      %p30 = por %p28, %p29
      %p31 = scmp.ne.s32.totalorder %s23, %s25
      %p32 = scmp.eq.s32.totalorder %s20, 2
      %p33 = por %p31, %p32
      %p34 = scmp.ne.s32.totalorder %s25, %s26
      %p35 = scmp.eq.s32.totalorder %s20, 0
      %p36 = por %p34, %p35
      %p37 = scmp.ne.s32.totalorder %s25, %s26
      %p38 = scmp.eq.s32.totalorder %s21, 2
      %p39 = por %p37, %p38
      %p41 = scmp.ne.s32.totalorder %s26, %s40
      %p42 = scmp.eq.s32.totalorder %s21, 0
      %p43 = por %p41, %p42
      %s44 = ssub.s32 %s15, %s22
      %p45 = scmp.eq.s32.totalorder %s44, 0
      %s47 = sadd.s32 %s46, 1
      %s48 = scalar_select %p45, %s46, %s47
      %p51 = pneg %p45
      %p52 = scmp.eq.s32.totalorder %s15, 2
      %p53 = por %p51, %p52
      %p54 = scmp.ne.s32.totalorder %s46, %s49
      %p55 = scmp.eq.s32.totalorder %s15, 0
      %p56 = por %p54, %p55
      %p57 = scmp.ne.s32.totalorder %s46, %s49
      %p58 = scmp.eq.s32.totalorder %s20, 2
      %p59 = por %p57, %p58
      %p60 = scmp.ne.s32.totalorder %s49, %s50
      %p61 = scmp.eq.s32.totalorder %s20, 0
      %p62 = por %p60, %p61
      %p63 = scmp.ne.s32.totalorder %s49, %s50
      %p64 = scmp.eq.s32.totalorder %s21, 2
      %p65 = por %p63, %p64
      %p67 = scmp.ne.s32.totalorder %s50, %s66
      %p68 = scmp.eq.s32.totalorder %s21, 0
      %p69 = por %p67, %p68
      %s70 = ssub.s32 %s15, %s22
      %p71 = scmp.eq.s32.totalorder %s70, 0
      %s73 = sadd.s32 %s72, 1
      %s74 = scalar_select %p71, %s72, %s73
      %p77 = pneg %p71
      %p78 = scmp.eq.s32.totalorder %s15, 2
      %p79 = por %p77, %p78
      %p80 = scmp.ne.s32.totalorder %s72, %s75
      %p81 = scmp.eq.s32.totalorder %s15, 0
      %p82 = por %p80, %p81
      %p83 = scmp.ne.s32.totalorder %s72, %s75
      %p84 = scmp.eq.s32.totalorder %s20, 2
      %p85 = por %p83, %p84
      %p86 = scmp.ne.s32.totalorder %s75, %s76
      %p87 = scmp.eq.s32.totalorder %s20, 0
      %p88 = por %p86, %p87
      %p89 = scmp.ne.s32.totalorder %s75, %s76
      %p90 = scmp.eq.s32.totalorder %s21, 2
      %p91 = por %p89, %p90
      %p93 = scmp.ne.s32.totalorder %s76, %s92
      %p94 = scmp.eq.s32.totalorder %s21, 0
      %p95 = por %p93, %p94
      %p96 = scmp.le.s32.totalorder 1, %s15
      %p97 = scmp.lt.s32.totalorder %s15, 4
      %p98 = pnand %p96, %p97
      %p99 = pneg %p98
      // Predicated region
      $region9: #{tpu_custom_call.1} parent=5 // pred_check
        _
      $region10: #{tpu_custom_call.1} parent=5 // pred_check_branch
        %101 = sbr.rel (%p98) target = $region12
      $region11: #{tpu_custom_call.1} parent=5 // pred_region
        %s102 = ssub.s32 %s15, 1
        // Predicated region
        $region13: #{tpu_custom_call.1} parent=11 // pred_check
          %p103 = pneg %p36
        $region14: #{tpu_custom_call.1} parent=11 // pred_check_branch
          %105 = sbr.rel (%p103) target = $region16
        $region15: #{tpu_custom_call.1} parent=11 // pred_region
          %107 = vsyncadd [#allocation3], 0
          %s108 = sshll.u32 %s0, 4
          %s109 = int_to_ptr.hbm [resolvable:$true] %s108
          %s110 = sshll.u32 [#allocation2], 4
          %s111 = int_to_ptr.vmem [resolvable:$true] %s110
          %116 = dma.hbm_to_vmem [thread:$0]  %s109, 8192, %s111, [#allocation3], 256, 256, 16
        $region16: #{tpu_custom_call.1} parent=11 // pred_fallthru
          _
      $region12: #{tpu_custom_call.1} parent=5 // pred_fallthru
        _
      %p117 = scmp.lt.s32.totalorder %s15, 3
      // Predicated region
      $region17: #{tpu_custom_call.1} parent=5 // pred_check
        %p118 = pneg %p117
      $region18: #{tpu_custom_call.1} parent=5 // pred_check_branch
        %120 = sbr.rel (%p118) target = $region20
      $region19: #{tpu_custom_call.1} parent=5 // pred_region
        // Predicated region
        $region21: #{tpu_custom_call.1} parent=19 // pred_check
          %p121 = pneg %p56
        $region22: #{tpu_custom_call.1} parent=19 // pred_check_branch
          %123 = sbr.rel (%p121) target = $region24
        $region23: #{tpu_custom_call.1} parent=19 // pred_region
          %s124 = sand.u32 %s46, 1
          %s125 = scalar_lea.sflag [#allocation6], %s124
          %s126 = sand.u32 %s46, 1
          %s127 = smul.addr %s126, 16
          %s128 = scalar_lea.vmem [#allocation5], %s127
          %130 = vsyncadd %s125, 0
          %s131 = smul.addr %s15, 2
          %s132 = smul.addr %s131, 8
          %s133 = scalar_lea.hbm %s1, %s132
          %s135 = sshll.u32 %s133, 4
          %s136 = int_to_ptr.hbm [resolvable:$true] %s135
          %s137 = sshll.u32 %s128, 4
          %s138 = int_to_ptr.vmem [resolvable:$true] %s137
          %140 = dma.hbm_to_vmem [thread:$0]  %s136, 256, %s138, %s125
        $region24: #{tpu_custom_call.1} parent=19 // pred_fallthru
          _
      $region20: #{tpu_custom_call.1} parent=5 // pred_fallthru
        _
      %p141 = scmp.le.s32.totalorder 1, %s15
      %p142 = scmp.lt.s32.totalorder %s15, 4
      %p143 = pnand %p141, %p142
      %p144 = pneg %p143
      // Predicated region
      $region25: #{tpu_custom_call.1} parent=5 // pred_check
        _
      $region26: #{tpu_custom_call.1} parent=5 // pred_check_branch
        %146 = sbr.rel (%p143) target = $region28
      $region27: #{tpu_custom_call.1} parent=5 // pred_region
        %s147 = ssub.s32 %s15, 1
        // Predicated region
        $region29: #{tpu_custom_call.1} parent=27 // pred_check
          %p148 = pneg %p36
        $region30: #{tpu_custom_call.1} parent=27 // pred_check_branch
          %150 = sbr.rel (%p148) target = $region32
        $region31: #{tpu_custom_call.1} parent=27 // pred_region
          %152 = dma.done [#allocation3], 8192
        $region32: #{tpu_custom_call.1} parent=27 // pred_fallthru
          _
        %s153 = sand.u32 %s49, 1
        %s154 = scalar_lea.sflag [#allocation6], %s153
        %s155 = sand.u32 %s49, 1
        %s156 = smul.addr %s155, 16
        %s157 = scalar_lea.vmem [#allocation5], %s156
        // Predicated region
        $region33: #{tpu_custom_call.1} parent=27 // pred_check
          %p158 = pneg %p62
        $region34: #{tpu_custom_call.1} parent=27 // pred_check_branch
          %160 = sbr.rel (%p158) target = $region36
        $region35: #{tpu_custom_call.1} parent=27 // pred_region
          %162 = dma.done %s154, 256
        $region36: #{tpu_custom_call.1} parent=27 // pred_fallthru
          _
        %p163 = pneg %p36
        %p164 = pneg %p33
        %s165 = sand.u32 %s49, 1
        %s166 = scalar_lea.sflag [#allocation6], %s165
        %s167 = sand.u32 %s49, 1
        %s168 = smul.addr %s167, 16
        %s169 = scalar_lea.vmem [#allocation5], %s168
        %p170 = pneg %p62
        %p171 = pneg %p59
        %p172 = pneg %p88
        %p173 = pneg %p85
        %s174 = sand.u32 %s75, 1
        %s175 = scalar_lea.sflag [#allocation4], %s174
        %s176 = sand.u32 %s75, 1
        %s177 = smul.addr %s176, 16
        %s178 = scalar_lea.vmem [#allocation7], %s177
        %v179 = vld [vmem:[%s157] sm:$0xff]
        %v180 = vld [vmem:[%s157 + $0x8] sm:$0xff]
        %v181 = vld [vmem:[#allocation2] sm:$0xff]
        %v182 = vld [vmem:[#allocation2 + $0x8] sm:$0xff]
        %v183 = vld [vmem:[#allocation2 + $0x10] sm:$0xff]
        %v184 = vld [vmem:[#allocation2 + $0x18] sm:$0xff]
        %v185 = vld [vmem:[#allocation2 + $0x20] sm:$0xff]
        %v186 = vld [vmem:[#allocation2 + $0x28] sm:$0xff]
        %v187 = vld [vmem:[#allocation2 + $0x30] sm:$0xff]
        %v188 = vld [vmem:[#allocation2 + $0x38] sm:$0xff]
        %v189 = vld [vmem:[#allocation2 + $0x40] sm:$0xff]
        %v190 = vld [vmem:[#allocation2 + $0x48] sm:$0xff]
        %v191 = vld [vmem:[#allocation2 + $0x50] sm:$0xff]
        %v192 = vld [vmem:[#allocation2 + $0x58] sm:$0xff]
        %v193 = vld [vmem:[#allocation2 + $0x60] sm:$0xff]
        %v194 = vld [vmem:[#allocation2 + $0x68] sm:$0xff]
        %v195 = vld [vmem:[#allocation2 + $0x70] sm:$0xff]
        %v196 = vld [vmem:[#allocation2 + $0x78] sm:$0xff]
        %v197 = vld [vmem:[#allocation2 + $0x80] sm:$0xff]
        %v198 = vld [vmem:[#allocation2 + $0x88] sm:$0xff]
        %v199 = vld [vmem:[#allocation2 + $0x90] sm:$0xff]
        %v200 = vld [vmem:[#allocation2 + $0x98] sm:$0xff]
        %v201 = vld [vmem:[#allocation2 + $0xa0] sm:$0xff]
        %v202 = vld [vmem:[#allocation2 + $0xa8] sm:$0xff]
        %v203 = vld [vmem:[#allocation2 + $0xb0] sm:$0xff]
        %v204 = vld [vmem:[#allocation2 + $0xb8] sm:$0xff]
        %v205 = vld [vmem:[#allocation2 + $0xc0] sm:$0xff]
        %v206 = vld [vmem:[#allocation2 + $0xc8] sm:$0xff]
        %v207 = vld [vmem:[#allocation2 + $0xd0] sm:$0xff]
        %v208 = vld [vmem:[#allocation2 + $0xd8] sm:$0xff]
        %v209 = vld [vmem:[#allocation2 + $0xe0] sm:$0xff]
        %v210 = vld [vmem:[#allocation2 + $0xe8] sm:$0xff]
        %v211 = vld [vmem:[#allocation2 + $0xf0] sm:$0xff]
        %v212 = vld [vmem:[#allocation2 + $0xf8] sm:$0xff]
        %v213 = vld [vmem:[#allocation2 + $0x100] sm:$0xff]
        %v214 = vld [vmem:[#allocation2 + $0x108] sm:$0xff]
        %v215 = vld [vmem:[#allocation2 + $0x110] sm:$0xff]
        %v216 = vld [vmem:[#allocation2 + $0x118] sm:$0xff]
        %v217 = vld [vmem:[#allocation2 + $0x120] sm:$0xff]
        %v218 = vld [vmem:[#allocation2 + $0x128] sm:$0xff]
        %v219 = vld [vmem:[#allocation2 + $0x130] sm:$0xff]
        %v220 = vld [vmem:[#allocation2 + $0x138] sm:$0xff]
        %v221 = vld [vmem:[#allocation2 + $0x140] sm:$0xff]
        %v222 = vld [vmem:[#allocation2 + $0x148] sm:$0xff]
        %v223 = vld [vmem:[#allocation2 + $0x150] sm:$0xff]
        %v224 = vld [vmem:[#allocation2 + $0x158] sm:$0xff]
        %v225 = vld [vmem:[#allocation2 + $0x160] sm:$0xff]
        %v226 = vld [vmem:[#allocation2 + $0x168] sm:$0xff]
        %v227 = vld [vmem:[#allocation2 + $0x170] sm:$0xff]
        %v228 = vld [vmem:[#allocation2 + $0x178] sm:$0xff]
        %v229 = vld [vmem:[#allocation2 + $0x180] sm:$0xff]
        %v230 = vld [vmem:[#allocation2 + $0x188] sm:$0xff]
        %v231 = vld [vmem:[#allocation2 + $0x190] sm:$0xff]
        %v232 = vld [vmem:[#allocation2 + $0x198] sm:$0xff]
        %v233 = vld [vmem:[#allocation2 + $0x1a0] sm:$0xff]
        %v234 = vld [vmem:[#allocation2 + $0x1a8] sm:$0xff]
        %v235 = vld [vmem:[#allocation2 + $0x1b0] sm:$0xff]
        %v236 = vld [vmem:[#allocation2 + $0x1b8] sm:$0xff]
        %v237 = vld [vmem:[#allocation2 + $0x1c0] sm:$0xff]
        %v238 = vld [vmem:[#allocation2 + $0x1c8] sm:$0xff]
        %v239 = vld [vmem:[#allocation2 + $0x1d0] sm:$0xff]
        %v240 = vld [vmem:[#allocation2 + $0x1d8] sm:$0xff]
        %v241 = vld [vmem:[#allocation2 + $0x1e0] sm:$0xff]
        %v242 = vld [vmem:[#allocation2 + $0x1e8] sm:$0xff]
        %v243 = vld [vmem:[#allocation2 + $0x1f0] sm:$0xff]
        %v244 = vld [vmem:[#allocation2 + $0x1f8] sm:$0xff]
        %245 = vmatpush.msra.mxu0 %v211
        %246 = vmatpush.msra.mxu0 %v209
        %247 = vmatpush.msra.mxu0 %v207
        %248 = vmatpush.msra.mxu0 %v205
        %249 = vmatpush.msra.mxu0 %v203
        %250 = vmatpush.msra.mxu0 %v201
        %251 = vmatpush.msra.mxu0 %v199
        %252 = vmatpush.msra.mxu0 %v197
        %253 = vmatpush.msra.mxu0 %v195
        %254 = vmatpush.msra.mxu0 %v193
        %255 = vmatpush.msra.mxu0 %v191
        %256 = vmatpush.msra.mxu0 %v189
        %257 = vmatpush.msra.mxu0 %v187
        %258 = vmatpush.msra.mxu0 %v185
        %259 = vmatpush.msra.mxu0 %v183
        %260 = vmatpush.msra.mxu0 %v181
        %261 = vmatmul.f32.gmra.mxu0 %v179
        %v262 = vpop.f32.mrf.mxu0
        %v263 = vadd.f32 0.0, %v262
        %264 = vdwg.mxu0
        %265 = vmatpush.msra.mxu0 %v243
        %266 = vmatpush.msra.mxu0 %v241
        %267 = vmatpush.msra.mxu0 %v239
        %268 = vmatpush.msra.mxu0 %v237
        %269 = vmatpush.msra.mxu0 %v235
        %270 = vmatpush.msra.mxu0 %v233
        %271 = vmatpush.msra.mxu0 %v231
        %272 = vmatpush.msra.mxu0 %v229
        %273 = vmatpush.msra.mxu0 %v227
        %274 = vmatpush.msra.mxu0 %v225
        %275 = vmatpush.msra.mxu0 %v223
        %276 = vmatpush.msra.mxu0 %v221
        %277 = vmatpush.msra.mxu0 %v219
        %278 = vmatpush.msra.mxu0 %v217
        %279 = vmatpush.msra.mxu0 %v215
        %280 = vmatpush.msra.mxu0 %v213
        %281 = vmatmul.f32.gmra.mxu0 %v180
        %v282 = vpop.f32.mrf.mxu0
        %v283 = vadd.f32 %v263, %v282
        %284 = vdwg.mxu0
        %285 = vmatpush.msra.mxu0 %v212
        %286 = vmatpush.msra.mxu0 %v210
        %287 = vmatpush.msra.mxu0 %v208
        %288 = vmatpush.msra.mxu0 %v206
        %289 = vmatpush.msra.mxu0 %v204
        %290 = vmatpush.msra.mxu0 %v202
        %291 = vmatpush.msra.mxu0 %v200
        %292 = vmatpush.msra.mxu0 %v198
        %293 = vmatpush.msra.mxu0 %v196
        %294 = vmatpush.msra.mxu0 %v194
        %295 = vmatpush.msra.mxu0 %v192
        %296 = vmatpush.msra.mxu0 %v190
        %297 = vmatpush.msra.mxu0 %v188
        %298 = vmatpush.msra.mxu0 %v186
        %299 = vmatpush.msra.mxu0 %v184
        %300 = vmatpush.msra.mxu0 %v182
        %301 = vmatmul.f32.gmra.mxu0 %v179
        %v302 = vpop.f32.mrf.mxu0
        %v303 = vadd.f32 0.0, %v302
        %304 = vdwg.mxu0
        %305 = vmatpush.msra.mxu0 %v244
        %306 = vmatpush.msra.mxu0 %v242
        %307 = vmatpush.msra.mxu0 %v240
        %308 = vmatpush.msra.mxu0 %v238
        %309 = vmatpush.msra.mxu0 %v236
        %310 = vmatpush.msra.mxu0 %v234
        %311 = vmatpush.msra.mxu0 %v232
        %312 = vmatpush.msra.mxu0 %v230
        %313 = vmatpush.msra.mxu0 %v228
        %314 = vmatpush.msra.mxu0 %v226
        %315 = vmatpush.msra.mxu0 %v224
        %316 = vmatpush.msra.mxu0 %v222
        %317 = vmatpush.msra.mxu0 %v220
        %318 = vmatpush.msra.mxu0 %v218
        %319 = vmatpush.msra.mxu0 %v216
        %320 = vmatpush.msra.mxu0 %v214
        %321 = vmatmul.f32.gmra.mxu0 %v180
        %v322 = vpop.f32.mrf.mxu0
        %v323 = vadd.f32 %v303, %v322
        %324 = vdwg.mxu0
        %325 = vst [vmem:[%s178] sm:$0xff] %v283
        %326 = vst [vmem:[%s178 + $0x8] sm:$0xff] %v323
        %s327 = sand.u32 %s75, 1
        %s328 = scalar_lea.sflag [#allocation4], %s327
        %s329 = sand.u32 %s75, 1
        %s330 = smul.addr %s329, 16
        %s331 = scalar_lea.vmem [#allocation7], %s330
        // Predicated region
        $region37: #{tpu_custom_call.1} parent=27 // pred_check
          %p332 = pneg %p85
        $region38: #{tpu_custom_call.1} parent=27 // pred_check_branch
          %334 = sbr.rel (%p332) target = $region40
        $region39: #{tpu_custom_call.1} parent=27 // pred_region
          %336 = vsyncadd %s328, 0
          %s337 = smul.addr %s20, 2
          %s338 = smul.addr %s337, 8
          %s339 = scalar_lea.hbm %s2, %s338
          %s341 = sshll.u32 %s331, 4
          %s342 = int_to_ptr.vmem [resolvable:$true] %s341
          %s343 = sshll.u32 %s339, 4
          %s344 = int_to_ptr.hbm [resolvable:$true] %s343
          %346 = dma.vmem_to_hbm [thread:$0]  %s342, 256, %s344, %s328
        $region40: #{tpu_custom_call.1} parent=27 // pred_fallthru
          _
      $region28: #{tpu_custom_call.1} parent=5 // pred_fallthru
        _
      %p347 = scmp.le.s32.totalorder 2, %s15
      // Predicated region
      $region41: #{tpu_custom_call.1} parent=5 // pred_check
        %p348 = pneg %p347
      $region42: #{tpu_custom_call.1} parent=5 // pred_check_branch
        %350 = sbr.rel (%p348) target = $region44
      $region43: #{tpu_custom_call.1} parent=5 // pred_region
        %s351 = ssub.s32 %s15, 2
        // Predicated region
        $region45: #{tpu_custom_call.1} parent=43 // pred_check
          %p352 = pneg %p91
        $region46: #{tpu_custom_call.1} parent=43 // pred_check_branch
          %354 = sbr.rel (%p352) target = $region48
        $region47: #{tpu_custom_call.1} parent=43 // pred_region
          %s355 = sand.u32 %s76, 1
          %s356 = scalar_lea.sflag [#allocation4], %s355
          %s357 = sand.u32 %s76, 1
          %s358 = smul.addr %s357, 16
          %s359 = scalar_lea.vmem [#allocation7], %s358
          %361 = dma.done %s356, 256
        $region48: #{tpu_custom_call.1} parent=43 // pred_fallthru
          _
      $region44: #{tpu_custom_call.1} parent=5 // pred_fallthru
        _
    $region6: #{tpu_custom_call.1} parent=1 // loop_footer
      %s19 = sadd.s32 1, %s15
    $region7: #{tpu_custom_call.1} parent=1 // loop_footer_branch
      %14 = sbr.rel target = $region3
    $region8: #{tpu_custom_call.1} parent=1 // loop_exit
      _
    %362 = vsyncpa [#allocation3], 1
    %s363 = scalar_lea.sflag [#allocation3], 1
    %364 = vsyncpa %s363, 1
    %365 = vsyncpa [#allocation6], 1
    %s366 = scalar_lea.sflag [#allocation6], 1
    %367 = vsyncpa %s366, 1
    %368 = vsyncpa [#allocation4], 1
    %s369 = scalar_lea.sflag [#allocation4], 1
    %370 = vsyncpa %s369, 1

</llo_original>
